<compile_context>
chip_gen: v6e
topology: v6e:2x2x1
jax: 0.10.0
libtpu: 0.0.40
codegen_flags: <defaults>
</compile_context>

<pallas_src>
import functools

import jax
import jax.numpy as jnp
from jax.experimental import pallas as pl
from jax.experimental.pallas import tpu as pltpu

_LANE = 128
_SUBLANE = 8
_SUB_ROWS = 64        # rows per fused inner-loop step (multiple of 32: safe
                      # sublane packing for f32 / bf16 / int8 / bool inputs)
_MIN_ROWS = 2 * _SUB_ROWS   # tiny inputs are rounded up to one block per split
_NEG_BIG = -1e9       # sigmoid(-1e9) == 0 exactly (tanh saturation)


def _round_up(x, m):
    return pl.cdiv(x, m) * m


def _vmem_budgets():
    """Returns (combined logits+targets bytes per grid step, scoped-VMEM limit)."""
    try:
        vmem = getattr(pltpu.get_tpu_info(), "vmem_capacity_bytes", None)
    except Exception:  # pragma: no cover - be robust on exotic setups
        vmem = None
    if vmem is not None and vmem >= 100 * 1024 * 1024:
        # v5e / v6e: 128 MiB VMEM -> bigger blocks amortize per-step overhead.
        return 16 * 1024 * 1024, 64 * 1024 * 1024
    # v7x (64 MiB per-TC VMEM) or unknown: stay conservative.
    return 8 * 1024 * 1024, 32 * 1024 * 1024


def _soft_dice_kernel(logits_ref, targets_ref, acc_ref, *,
                      rows, chunks_per_split, block_rows, needs_mask):
    # logits_ref/targets_ref: (1, block_rows, 128); acc_ref: (1, 1, 24, 128) f32
    # acc rows 0:8 = (m1*m2) partials, 8:16 = m1 partials, 16:24 = m2 partials.
    s = pl.program_id(1)
    j = pl.program_id(2)

    @pl.when(j == 0)
    def _():
        acc_ref[...] = jnp.zeros_like(acc_ref)

    if needs_mask:
        # Global row of this block's first row, UNclamped: phantom chunks whose
        # DMA was clamped in the index_map end up fully masked here.
        row0 = (s * chunks_per_split + j) * block_rows
        row_ids = jax.lax.broadcasted_iota(jnp.int32, (_SUB_ROWS, _LANE), 0)

    zero = jnp.zeros((_SUBLANE, _LANE), jnp.float32)

    def body(i, carry):
        inter, m1, m2 = carry
        r0 = pl.multiple_of(i * _SUB_ROWS, _SUB_ROWS)
        x = logits_ref[0, pl.ds(r0, _SUB_ROWS), :].astype(jnp.float32)
        t = targets_ref[0, pl.ds(r0, _SUB_ROWS), :].astype(jnp.float32)
        if needs_mask:
            valid = (row_ids + (row0 + r0)) < rows
            # Mask BEFORE the sigmoid so garbage/NaN tail reads cannot leak.
            x = jnp.where(valid, x, _NEG_BIG)
            t = jnp.where(valid, t, 0.0)
        p = 0.5 * (jnp.tanh(0.5 * x) + 1.0)       # sigmoid on the EUP slot
        pr = p.reshape(_SUB_ROWS // _SUBLANE, _SUBLANE, _LANE)
        tr = t.reshape(_SUB_ROWS // _SUBLANE, _SUBLANE, _LANE)
        # Pure vreg add-trees onto (8, 128) carries (no cross-lane XLU work).
        inter = inter + jnp.sum(pr * tr, axis=0)
        m1 = m1 + jnp.sum(pr, axis=0)
        m2 = m2 + jnp.sum(tr, axis=0)
        return inter, m1, m2

    inter, m1, m2 = jax.lax.fori_loop(
        0, block_rows // _SUB_ROWS, body, (zero, zero, zero))

    acc_ref[0, 0, 0:8, :] += inter
    acc_ref[0, 0, 8:16, :] += m1
    acc_ref[0, 0, 16:24, :] += m2


def soft_dice_loss(logits, targets):
    """SoftDiceLoss.forward: logits/targets of shape (N, ...)."""
    num = logits.shape[0]
    logits2d = logits.reshape(num, -1)
    targets2d = targets.reshape(num, -1)     # stream in the original (narrow) dtype
    feat = logits2d.shape[1]

    rows = pl.cdiv(feat, _LANE)
    rows_arr = max(rows, _MIN_ROWS)          # tiny inputs: one full block per split
    feat_arr = rows_arr * _LANE

    if feat_arr != feat:
        # TODO(synk): this host-side pad copy only remains for (a) feature
        # counts that are not 128-aligned (the free (N, rows, 128) view needs
        # lane-aligned rows) and (b) tiny inputs (< 2 blocks of rows, where the
        # copy is negligible).  Block alignment for large inputs is handled
        # fully in-kernel, so the big streaming case never pays a pad copy.
        pad = feat_arr - feat
        logits2d = jnp.pad(logits2d, ((0, 0), (0, pad)),
                           constant_values=_NEG_BIG)     # sigmoid(-1e9) -> 0
        targets2d = jnp.pad(targets2d, ((0, 0), (0, pad)), constant_values=0)

    logits3d = logits2d.reshape(num, rows_arr, _LANE)
    targets3d = targets2d.reshape(num, rows_arr, _LANE)

    target_bytes, vmem_limit = _vmem_budgets()
    l_bytes = jnp.dtype(logits3d.dtype).itemsize
    t_bytes = jnp.dtype(targets3d.dtype).itemsize
    bytes_per_row = _LANE * (l_bytes + t_bytes)
    target_rows = max(_SUB_ROWS,
                      (target_bytes // bytes_per_row) // _SUB_ROWS * _SUB_ROWS)

    # Split each sample's reduction in two so both v7x TensorCores get work
    # even when N == 1 (harmless on single-core v5e/v6e).
    n_split = 2
    rows_per_split = _round_up(pl.cdiv(rows_arr, n_split), _SUB_ROWS)
    chunks_per_split = pl.cdiv(rows_per_split, target_rows)
    block_rows = _round_up(pl.cdiv(rows_per_split, chunks_per_split), _SUB_ROWS)

    covered_rows = n_split * chunks_per_split * block_rows
    needs_mask = covered_rows != rows_arr
    max_block = pl.cdiv(rows_arr, block_rows) - 1   # keep phantom-chunk DMAs in bounds

    def in_index(n, s, j):
        c = jnp.minimum(s * chunks_per_split + j, max_block)
        return (n, c, 0)

    in_spec = pl.BlockSpec((1, block_rows, _LANE), in_index)
    out_spec = pl.BlockSpec((1, 1, 3 * _SUBLANE, _LANE),
                            lambda n, s, j: (n, s, 0, 0))

    kernel = functools.partial(
        _soft_dice_kernel,
        rows=rows_arr, chunks_per_split=chunks_per_split,
        block_rows=block_rows, needs_mask=needs_mask)

    acc = pl.pallas_call(
        kernel,
        out_shape=jax.ShapeDtypeStruct((num, n_split, 3 * _SUBLANE, _LANE),
                                       jnp.float32),
        grid_spec=pltpu.PrefetchScalarGridSpec(
            num_scalar_prefetch=0,
            grid=(num, n_split, chunks_per_split),
            in_specs=[in_spec, in_spec],
            out_specs=out_spec,
        ),
        compiler_params=pltpu.CompilerParams(
            dimension_semantics=("parallel", "parallel", "arbitrary"),
            vmem_limit_bytes=vmem_limit,
        ),
    )(logits3d, targets3d)

    # Tiny epilogue: a single reduction over (N, 2, 3, 8, 128) partial sums.
    smooth = 1.0
    sums = acc.reshape(num, n_split, 3, _SUBLANE, _LANE).sum(axis=(1, 3, 4))
    inter_s, m1_s, m2_s = sums[:, 0], sums[:, 1], sums[:, 2]
    score = 2.0 * (inter_s + smooth) / (m1_s + m2_s + smooth)
    return 1.0 - jnp.sum(score) / num


def _soft_dice_loss_ref(logits, targets):
    num = logits.shape[0]
    smooth = 1.0
    probs = jax.nn.sigmoid(logits.astype(jnp.float32))
    m1 = probs.reshape(num, -1)
    m2 = targets.astype(jnp.float32).reshape(num, -1)
    inter = (m1 * m2).sum(1)
    score = 2.0 * (inter + smooth) / (m1.sum(1) + m2.sum(1) + smooth)
    return 1.0 - score.sum() / num


if __name__ == "__main__":
    key = jax.random.PRNGKey(0)
    k1, k2, k3, k4 = jax.random.split(key, 4)

    # Case 1: lane-aligned feature count, f32 logits / f32 targets.
    N, C, H, W = 2, 4, 16, 16
    logits = jax.random.normal(k1, (N, C, H, W), dtype=jnp.float32)
    targets = (jax.random.uniform(k2, (N, C, H, W)) > 0.5).astype(jnp.float32)
    loss = jax.block_until_ready(soft_dice_loss(logits, targets))
    ref = jax.block_until_ready(_soft_dice_loss_ref(logits, targets))
    assert jnp.allclose(loss, ref, atol=1e-4, rtol=1e-4), (loss, ref)

    # Case 2: ragged feature count, bf16 logits / bool targets (narrow dtypes
    # streamed as-is; cast to f32 only inside the kernel).
    N2, C2, H2, W2 = 3, 3, 7, 9
    logits2 = jax.random.normal(k3, (N2, C2, H2, W2), dtype=jnp.bfloat16)
    targets2 = jax.random.uniform(k4, (N2, C2, H2, W2)) > 0.5
    loss2 = jax.block_until_ready(soft_dice_loss(logits2, targets2))
    ref2 = jax.block_until_ready(_soft_dice_loss_ref(logits2, targets2))
    assert jnp.allclose(loss2, ref2, atol=1e-4, rtol=1e-4), (loss2, ref2)

    print("KERNEL_OK")
</pallas_src>

<mosaic_0001>
module attributes {stable_mosaic.version = 11 : i64} {
  func.func @_soft_dice_kernel(%arg0: i32, %arg1: i32, %arg2: i32, %arg3: memref<1x64x128xf32, #tpu.memory_space<vmem>>, %arg4: memref<1x64x128xf32, #tpu.memory_space<vmem>>, %arg5: memref<1x1x24x128xf32, #tpu.memory_space<vmem>>) attributes {dimension_semantics = [#tpu.dimension_semantics<parallel>, #tpu.dimension_semantics<parallel>, #tpu.dimension_semantics<arbitrary>], iteration_bounds = array<i64: 2, 2, 1>, scalar_prefetch = 0 : i64, scratch_operands = 0 : i64, tpu.core_type = #tpu.core_type<tc>, window_params = [{transform_indices = @transform_0, window_bounds = array<i64: 1, 64, 128>}, {transform_indices = @transform_1, window_bounds = array<i64: 1, 64, 128>}, {transform_indices = @transform_2, window_bounds = array<i64: 1, 1, 24, 128>}]} {
    %c0_i32 = arith.constant 0 : i32
    %0 = arith.cmpi eq, %arg2, %c0_i32 : i32
    %1 = arith.extui %0 : i1 to i32
    %c0_i32_0 = arith.constant 0 : i32
    %2 = arith.cmpi ne, %1, %c0_i32_0 : i32
    scf.if %2 {
      %cst_33 = arith.constant 0.000000e+00 : f32
      %46 = vector.broadcast %cst_33 : f32 to vector<1x1x24x128xf32>
      %c0_34 = arith.constant 0 : index
      %c0_35 = arith.constant 0 : index
      %c0_36 = arith.constant 0 : index
      %c0_37 = arith.constant 0 : index
      %47 = vector.load %arg5[%c0_34, %c0_35, %c0_36, %c0_37] : memref<1x1x24x128xf32, #tpu.memory_space<vmem>>, vector<1x1x24x128xf32>
      tpu.vector_store %arg5[%c0_34, %c0_35, %c0_36, %c0_37], %46 {strides = array<i32>} : memref<1x1x24x128xf32, #tpu.memory_space<vmem>>, vector<1x1x24x128xf32>,
    } else {
    }
    %cst = arith.constant 0.000000e+00 : f32
    %3 = vector.broadcast %cst : f32 to vector<8x128xf32>
    %c0_i32_1 = arith.constant 0 : i32
    %c64_i32 = arith.constant 64 : i32
    %4 = arith.muli %c0_i32_1, %c64_i32 : i32
    %5 = tpu.assume_multiple %4, 64 : i32
    %c0 = arith.constant 0 : index
    %6 = arith.index_cast %5 : i32 to index
    %c0_2 = arith.constant 0 : index
    %7 = vector.load %arg3[%c0, %6, %c0_2] : memref<1x64x128xf32, #tpu.memory_space<vmem>>, vector<1x64x128xf32>
    %8 = vector.shape_cast %7 : vector<1x64x128xf32> to vector<64x128xf32>
    %c0_3 = arith.constant 0 : index
    %9 = arith.index_cast %5 : i32 to index
    %c0_4 = arith.constant 0 : index
    %10 = vector.load %arg4[%c0_3, %9, %c0_4] : memref<1x64x128xf32, #tpu.memory_space<vmem>>, vector<1x64x128xf32>
    %11 = vector.shape_cast %10 : vector<1x64x128xf32> to vector<64x128xf32>
    %cst_5 = arith.constant 5.000000e-01 : f32
    %12 = vector.broadcast %cst_5 : f32 to vector<64x128xf32>
    %13 = arith.mulf %12, %8 : vector<64x128xf32>
    %14 = math.tanh %13 : vector<64x128xf32>
    %cst_6 = arith.constant 1.000000e+00 : f32
    %15 = vector.broadcast %cst_6 : f32 to vector<64x128xf32>
    %16 = arith.addf %14, %15 : vector<64x128xf32>
    %cst_7 = arith.constant 5.000000e-01 : f32
    %17 = vector.broadcast %cst_7 : f32 to vector<64x128xf32>
    %18 = arith.mulf %17, %16 : vector<64x128xf32>
    %19 = vector.shape_cast %18 : vector<64x128xf32> to vector<8x8x128xf32>
    %20 = vector.shape_cast %11 : vector<64x128xf32> to vector<8x8x128xf32>
    %21 = arith.mulf %19, %20 : vector<8x8x128xf32>
    %cst_8 = arith.constant dense<0.000000e+00> : vector<8x128xf32>
    %22 = vector.multi_reduction <add>, %21, %cst_8 [0] : vector<8x8x128xf32> to vector<8x128xf32>
    %23 = arith.addf %3, %22 : vector<8x128xf32>
    %cst_9 = arith.constant dense<0.000000e+00> : vector<8x128xf32>
    %24 = vector.multi_reduction <add>, %19, %cst_9 [0] : vector<8x8x128xf32> to vector<8x128xf32>
    %25 = arith.addf %3, %24 : vector<8x128xf32>
    %cst_10 = arith.constant dense<0.000000e+00> : vector<8x128xf32>
    %26 = vector.multi_reduction <add>, %20, %cst_10 [0] : vector<8x8x128xf32> to vector<8x128xf32>
    %27 = arith.addf %3, %26 : vector<8x128xf32>
    %c1_i32 = arith.constant 1 : i32
    %c0_11 = arith.constant 0 : index
    %c0_12 = arith.constant 0 : index
    %c0_13 = arith.constant 0 : index
    %c0_14 = arith.constant 0 : index
    %28 = vector.load %arg5[%c0_11, %c0_12, %c0_13, %c0_14] : memref<1x1x24x128xf32, #tpu.memory_space<vmem>>, vector<1x1x8x128xf32>
    %29 = vector.shape_cast %28 : vector<1x1x8x128xf32> to vector<8x128xf32>
    %30 = arith.addf %29, %23 : vector<8x128xf32>
    %c0_15 = arith.constant 0 : index
    %c0_16 = arith.constant 0 : index
    %c0_17 = arith.constant 0 : index
    %c0_18 = arith.constant 0 : index
    %31 = vector.load %arg5[%c0_15, %c0_16, %c0_17, %c0_18] : memref<1x1x24x128xf32, #tpu.memory_space<vmem>>, vector<1x1x8x128xf32>
    %32 = vector.shape_cast %31 : vector<1x1x8x128xf32> to vector<8x128xf32>
    %33 = vector.shape_cast %30 : vector<8x128xf32> to vector<1x1x8x128xf32>
    tpu.vector_store %arg5[%c0_15, %c0_16, %c0_17, %c0_18], %33 {strides = array<i32>} : memref<1x1x24x128xf32, #tpu.memory_space<vmem>>, vector<1x1x8x128xf32>,
    %c0_19 = arith.constant 0 : index
    %c0_20 = arith.constant 0 : index
    %c8 = arith.constant 8 : index
    %c0_21 = arith.constant 0 : index
    %34 = vector.load %arg5[%c0_19, %c0_20, %c8, %c0_21] : memref<1x1x24x128xf32, #tpu.memory_space<vmem>>, vector<1x1x8x128xf32>
    %35 = vector.shape_cast %34 : vector<1x1x8x128xf32> to vector<8x128xf32>
    %36 = arith.addf %35, %25 : vector<8x128xf32>
    %c0_22 = arith.constant 0 : index
    %c0_23 = arith.constant 0 : index
    %c8_24 = arith.constant 8 : index
    %c0_25 = arith.constant 0 : index
    %37 = vector.load %arg5[%c0_22, %c0_23, %c8_24, %c0_25] : memref<1x1x24x128xf32, #tpu.memory_space<vmem>>, vector<1x1x8x128xf32>
    %38 = vector.shape_cast %37 : vector<1x1x8x128xf32> to vector<8x128xf32>
    %39 = vector.shape_cast %36 : vector<8x128xf32> to vector<1x1x8x128xf32>
    tpu.vector_store %arg5[%c0_22, %c0_23, %c8_24, %c0_25], %39 {strides = array<i32>} : memref<1x1x24x128xf32, #tpu.memory_space<vmem>>, vector<1x1x8x128xf32>,
    %c0_26 = arith.constant 0 : index
    %c0_27 = arith.constant 0 : index
    %c16 = arith.constant 16 : index
    %c0_28 = arith.constant 0 : index
    %40 = vector.load %arg5[%c0_26, %c0_27, %c16, %c0_28] : memref<1x1x24x128xf32, #tpu.memory_space<vmem>>, vector<1x1x8x128xf32>
    %41 = vector.shape_cast %40 : vector<1x1x8x128xf32> to vector<8x128xf32>
    %42 = arith.addf %41, %27 : vector<8x128xf32>
    %c0_29 = arith.constant 0 : index
    %c0_30 = arith.constant 0 : index
    %c16_31 = arith.constant 16 : index
    %c0_32 = arith.constant 0 : index
    %43 = vector.load %arg5[%c0_29, %c0_30, %c16_31, %c0_32] : memref<1x1x24x128xf32, #tpu.memory_space<vmem>>, vector<1x1x8x128xf32>
    %44 = vector.shape_cast %43 : vector<1x1x8x128xf32> to vector<8x128xf32>
    %45 = vector.shape_cast %42 : vector<8x128xf32> to vector<1x1x8x128xf32>
    tpu.vector_store %arg5[%c0_29, %c0_30, %c16_31, %c0_32], %45 {strides = array<i32>} : memref<1x1x24x128xf32, #tpu.memory_space<vmem>>, vector<1x1x8x128xf32>,
    return
  }
  func.func @transform_0(%arg0: i32, %arg1: i32, %arg2: i32) -> (i32, i32, i32) {
    %c1_i32 = arith.constant 1 : i32
    %0 = arith.muli %arg1, %c1_i32 : i32
    %1 = arith.addi %0, %arg2 : i32
    %c1_i32_0 = arith.constant 1 : i32
    %2 = arith.minsi %1, %c1_i32_0 : i32
    %c0_i32 = arith.constant 0 : i32
    %c0_i32_1 = arith.constant 0 : i32
    return %arg0, %2, %c0_i32 : i32, i32, i32
  }
  func.func @transform_1(%arg0: i32, %arg1: i32, %arg2: i32) -> (i32, i32, i32) {
    %c1_i32 = arith.constant 1 : i32
    %0 = arith.muli %arg1, %c1_i32 : i32
    %1 = arith.addi %0, %arg2 : i32
    %c1_i32_0 = arith.constant 1 : i32
    %2 = arith.minsi %1, %c1_i32_0 : i32
    %c0_i32 = arith.constant 0 : i32
    %c0_i32_1 = arith.constant 0 : i32
    return %arg0, %2, %c0_i32 : i32, i32, i32
  }
  func.func @transform_2(%arg0: i32, %arg1: i32, %arg2: i32) -> (i32, i32, i32, i32) {
    %c0_i32 = arith.constant 0 : i32
    %c0_i32_0 = arith.constant 0 : i32
    %c0_i32_1 = arith.constant 0 : i32
    return %arg0, %arg1, %c0_i32, %c0_i32_0 : i32, i32, i32, i32
  }
}

</mosaic_0001>

<llo_original>
// kernel: tpu_custom_call.1
$region0: #{tpu_custom_call.1}
  #allocation0 [shape = 'u32[]', space=smem, size = 0x4, offset = 0x4, fixed_abs, tag = 'smem constant byte address 0x4 - core index']
  #allocation1 [shape = 'u32[144,128]{1,0:T(1,128)}', space=vmem, size = 0x12000, scoped, tag = 'internal scratch']
  %s0 = inlined_call_operand.hbm [shape: f32[2,128,128], index: 0, kind: input, shape index: {}]
  %s1 = inlined_call_operand.hbm [shape: f32[2,128,128], index: 1, kind: input, shape index: {}]
  %s2 = inlined_call_operand.hbm [shape: f32[2,2,24,128], index: 2, kind: output, shape index: {}]
  %s3 = sld [smem:[#allocation0]]
  $region53: #{tpu_custom_call.1} parent=0
    _
  %s5 = ssub.s32 1, %s3
  %s6 = scalar_select 0, %s5, %s3
  $region1: #{tpu_custom_call.1} parent=0
    #allocation2 [shape = 'u8[65536]{0}', space=vmem, size = 0x10000, scoped, tag = 'input window, operand 0']
    #allocation3 [shape = 's32[2]{0}', space=sflag, size = 0x8, scoped, tag = 'scoped memory for tpu_custom_call.1']
    #allocation4 [shape = 's32[2]{0}', space=sflag, size = 0x8, scoped, tag = 'scoped memory for tpu_custom_call.1']
    #allocation5 [shape = 'u8[65536]{0}', space=vmem, size = 0x10000, scoped, tag = 'input window, operand 1']
    #allocation6 [shape = 's32[2]{0}', space=sflag, size = 0x8, scoped, tag = 'scoped memory for tpu_custom_call.1']
    #allocation7 [shape = 'u8[24576]{0}', space=vmem, size = 0x6000, scoped, tag = 'output window, operand 0']
    %7 = vsyncpa [#allocation3], 0
    %s8 = scalar_lea.sflag [#allocation3], 1
    %9 = vsyncpa %s8, 0
    %10 = vsyncpa [#allocation6], 0
    %s11 = scalar_lea.sflag [#allocation6], 1
    %12 = vsyncpa %s11, 0
    %13 = vsyncpa [#allocation4], 0
    %s14 = scalar_lea.sflag [#allocation4], 1
    %15 = vsyncpa %s14, 0
    loop: start=0, step=1, limit=6
    $region2: #{tpu_custom_call.1} parent=1 // loop_pre_header
      _
    $region3: #{tpu_custom_call.1} parent=1 // loop_header
      %s17 = sphi 0, %s21
      %p18 = scmp.ge.s32.totalorder %s17, 6
      %s24 = sphi 0, %s43
      %s25 = sphi 0, %s39
      %s26 = sphi 0, %s35
      %s27 = sphi 0, %s24
      %s28 = sphi 0, %s25
      %s29 = sphi 0, %s26
      %s30 = sphi 0, %s27
      %s31 = sphi 0, %s28
      %s32 = sphi 0, %s29
      %s54 = sphi 0, %s56
      %s57 = sphi 0, %s54
      %s58 = sphi 0, %s57
      %s74 = sphi 0, %s58
      %s88 = sphi 0, %s90
      %s91 = sphi 0, %s88
      %s92 = sphi 0, %s91
      %s108 = sphi 0, %s92
      %s116 = sphi 0, %s118
      %s119 = sphi 0, %s116
      %s120 = sphi 0, %s119
      %s136 = sphi 0, %s120
    $region4: #{tpu_custom_call.1} parent=1 // loop_header_branch
      %20 = sbr.rel (%p18) target = $region8
    $region5: #{tpu_custom_call.1} parent=1 // loop_body
      %s22 = ssub.s32 %s17, 1
      %s23 = ssub.s32 %s17, 2
      %s33 = sadd.s32 1, %s26
      %p34 = scmp.ge.s32.totalorder %s33, 1
      %s35 = scalar_select %p34, 0, %s33
      %s36 = sadd.s32 1, %s25
      %s37 = scalar_select %p34, %s36, %s25
      %p38 = scmp.ge.s32.totalorder %s37, 2
      %s39 = scalar_select %p38, 0, %s37
      %s40 = sadd.s32 1, %s24
      %s41 = scalar_select %p38, %s40, %s24
      %p42 = scmp.ge.s32.totalorder %s41, 2
      %s43 = scalar_select %p42, 0, %s41
      %s44 = sadd.s32 %s25, %s26
      %p45 = scmp.lt.s32.totalorder %s44, 1
      %s46 = scalar_select %p45, %s44, 1
      %s47 = sadd.s32 %s39, %s35
      %p48 = scmp.lt.s32.totalorder %s47, 1
      %s49 = scalar_select %p48, %s47, 1
      %s50 = ssub.s32 %s24, %s43
      %s51 = ssub.s32 %s46, %s49
      %s52 = sor.u32 %s50, %s51
      %p53 = scmp.eq.s32.totalorder %s52, 0
      %s55 = sadd.s32 %s54, 1
      %s56 = scalar_select %p53, %s54, %s55
      %p59 = pneg %p53
      %p60 = scmp.eq.s32.totalorder %s17, 3
      %p61 = por %p59, %p60
      %p62 = scmp.ne.s32.totalorder %s54, %s57
      %p63 = scmp.eq.s32.totalorder %s17, 0
      %p64 = por %p62, %p63
      %p65 = scmp.ne.s32.totalorder %s54, %s57
      %p66 = scmp.eq.s32.totalorder %s22, 3
      %p67 = por %p65, %p66
      %p68 = scmp.ne.s32.totalorder %s57, %s58
      %p69 = scmp.eq.s32.totalorder %s22, 0
      %p70 = por %p68, %p69
      %p71 = scmp.ne.s32.totalorder %s57, %s58
      %p72 = scmp.eq.s32.totalorder %s23, 3
      %p73 = por %p71, %p72
      %p75 = scmp.ne.s32.totalorder %s58, %s74
      %p76 = scmp.eq.s32.totalorder %s23, 0
      %p77 = por %p75, %p76
      %s78 = sadd.s32 %s25, %s26
      %p79 = scmp.lt.s32.totalorder %s78, 1
      %s80 = scalar_select %p79, %s78, 1
      %s81 = sadd.s32 %s39, %s35
      %p82 = scmp.lt.s32.totalorder %s81, 1
      %s83 = scalar_select %p82, %s81, 1
      %s84 = ssub.s32 %s24, %s43
      %s85 = ssub.s32 %s80, %s83
      %s86 = sor.u32 %s84, %s85
      %p87 = scmp.eq.s32.totalorder %s86, 0
      %s89 = sadd.s32 %s88, 1
      %s90 = scalar_select %p87, %s88, %s89
      %p93 = pneg %p87
      %p94 = scmp.eq.s32.totalorder %s17, 3
      %p95 = por %p93, %p94
      %p96 = scmp.ne.s32.totalorder %s88, %s91
      %p97 = scmp.eq.s32.totalorder %s17, 0
      %p98 = por %p96, %p97
      %p99 = scmp.ne.s32.totalorder %s88, %s91
      %p100 = scmp.eq.s32.totalorder %s22, 3
      %p101 = por %p99, %p100
      %p102 = scmp.ne.s32.totalorder %s91, %s92
      %p103 = scmp.eq.s32.totalorder %s22, 0
      %p104 = por %p102, %p103
      %p105 = scmp.ne.s32.totalorder %s91, %s92
      %p106 = scmp.eq.s32.totalorder %s23, 3
      %p107 = por %p105, %p106
      %p109 = scmp.ne.s32.totalorder %s92, %s108
      %p110 = scmp.eq.s32.totalorder %s23, 0
      %p111 = por %p109, %p110
      %s112 = ssub.s32 %s24, %s43
      %s113 = ssub.s32 %s25, %s39
      %s114 = sor.u32 %s112, %s113
      %p115 = scmp.eq.s32.totalorder %s114, 0
      %s117 = sadd.s32 %s116, 1
      %s118 = scalar_select %p115, %s116, %s117
      %p121 = pneg %p115
      %p122 = scmp.eq.s32.totalorder %s17, 3
      %p123 = por %p121, %p122
      %p124 = scmp.ne.s32.totalorder %s116, %s119
      %p125 = scmp.eq.s32.totalorder %s17, 0
      %p126 = por %p124, %p125
      %p127 = scmp.ne.s32.totalorder %s116, %s119
      %p128 = scmp.eq.s32.totalorder %s22, 3
      %p129 = por %p127, %p128
      %p130 = scmp.ne.s32.totalorder %s119, %s120
      %p131 = scmp.eq.s32.totalorder %s22, 0
      %p132 = por %p130, %p131
      %p133 = scmp.ne.s32.totalorder %s119, %s120
      %p134 = scmp.eq.s32.totalorder %s23, 3
      %p135 = por %p133, %p134
      %p137 = scmp.ne.s32.totalorder %s120, %s136
      %p138 = scmp.eq.s32.totalorder %s23, 0
      %p139 = por %p137, %p138
      %p140 = scmp.le.s32.totalorder 1, %s17
      %p141 = scmp.lt.s32.totalorder %s17, 5
      %p142 = pnand %p140, %p141
      %p143 = pneg %p142
      // Predicated region
      $region9: #{tpu_custom_call.1} parent=5 // pred_check
        _
      $region10: #{tpu_custom_call.1} parent=5 // pred_check_branch
        %145 = sbr.rel (%p142) target = $region12
      $region11: #{tpu_custom_call.1} parent=5 // pred_region
        %s146 = ssub.s32 %s17, 1
      $region12: #{tpu_custom_call.1} parent=5 // pred_fallthru
        _
      %p147 = scmp.lt.s32.totalorder %s17, 4
      // Predicated region
      $region13: #{tpu_custom_call.1} parent=5 // pred_check
        %p148 = pneg %p147
      $region14: #{tpu_custom_call.1} parent=5 // pred_check_branch
        %150 = sbr.rel (%p148) target = $region16
      $region15: #{tpu_custom_call.1} parent=5 // pred_region
        // Predicated region
        $region17: #{tpu_custom_call.1} parent=15 // pred_check
          %p151 = pneg %p64
        $region18: #{tpu_custom_call.1} parent=15 // pred_check_branch
          %153 = sbr.rel (%p151) target = $region20
        $region19: #{tpu_custom_call.1} parent=15 // pred_region
          %s154 = sand.u32 %s54, 1
          %s155 = scalar_lea.sflag [#allocation3], %s154
          %s156 = sand.u32 %s54, 1
          %s157 = smul.addr %s156, 64
          %s158 = scalar_lea.vmem [#allocation2], %s157
          %s159 = sadd.s32 %s25, %s26
          %p160 = scmp.lt.s32.totalorder %s159, 1
          %s161 = scalar_select %p160, %s159, 1
          %s162 = smul.u32 8, %s161
          %s164 = ssub.s32 1024, 1024
          %165 = vsyncadd %s155, %s164
          %s166 = smul.addr %s24, 16
          %s167 = sadd.s32 %s162, %s166
          %s168 = smul.addr %s167, 128
          %s169 = scalar_lea.hbm %s0, %s168
          %s170 = sshll.u32 %s158, 4
          %s171 = int_to_ptr.vmem [resolvable:$true] %s170
          %176 = dma.hbm_to_vmem [thread:$0]  %s169, 1024, %s171, %s155, 128, 128, 8
        $region20: #{tpu_custom_call.1} parent=15 // pred_fallthru
          _
        // Predicated region
        $region21: #{tpu_custom_call.1} parent=15 // pred_check
          %p177 = pneg %p98
        $region22: #{tpu_custom_call.1} parent=15 // pred_check_branch
          %179 = sbr.rel (%p177) target = $region24
        $region23: #{tpu_custom_call.1} parent=15 // pred_region
          %s180 = sand.u32 %s88, 1
          %s181 = scalar_lea.sflag [#allocation6], %s180
          %s182 = sand.u32 %s88, 1
          %s183 = smul.addr %s182, 64
          %s184 = scalar_lea.vmem [#allocation5], %s183
          %s185 = sadd.s32 %s25, %s26
          %p186 = scmp.lt.s32.totalorder %s185, 1
          %s187 = scalar_select %p186, %s185, 1
          %s188 = smul.u32 8, %s187
          %s190 = ssub.s32 1024, 1024
          %191 = vsyncadd %s181, %s190
          %s192 = smul.addr %s24, 16
          %s193 = sadd.s32 %s188, %s192
          %s194 = smul.addr %s193, 128
          %s195 = scalar_lea.hbm %s1, %s194
          %s196 = sshll.u32 %s184, 4
          %s197 = int_to_ptr.vmem [resolvable:$true] %s196
          %202 = dma.hbm_to_vmem [thread:$0]  %s195, 1024, %s197, %s181, 128, 128, 8
        $region24: #{tpu_custom_call.1} parent=15 // pred_fallthru
          _
      $region16: #{tpu_custom_call.1} parent=5 // pred_fallthru
        _
      %p203 = scmp.le.s32.totalorder 1, %s17
      %p204 = scmp.lt.s32.totalorder %s17, 5
      %p205 = pnand %p203, %p204
      %p206 = pneg %p205
      // Predicated region
      $region25: #{tpu_custom_call.1} parent=5 // pred_check
        _
      $region26: #{tpu_custom_call.1} parent=5 // pred_check_branch
        %208 = sbr.rel (%p205) target = $region28
      $region27: #{tpu_custom_call.1} parent=5 // pred_region
        %s209 = ssub.s32 %s17, 1
        %s210 = sand.u32 %s57, 1
        %s211 = scalar_lea.sflag [#allocation3], %s210
        %s212 = sand.u32 %s57, 1
        %s213 = smul.addr %s212, 64
        %s214 = scalar_lea.vmem [#allocation2], %s213
        // Predicated region
        $region29: #{tpu_custom_call.1} parent=27 // pred_check
          %p215 = pneg %p70
        $region30: #{tpu_custom_call.1} parent=27 // pred_check_branch
          %217 = sbr.rel (%p215) target = $region32
        $region31: #{tpu_custom_call.1} parent=27 // pred_region
          %218 = dma.done %s211, 1024
        $region32: #{tpu_custom_call.1} parent=27 // pred_fallthru
          _
        %s219 = sand.u32 %s91, 1
        %s220 = scalar_lea.sflag [#allocation6], %s219
        %s221 = sand.u32 %s91, 1
        %s222 = smul.addr %s221, 64
        %s223 = scalar_lea.vmem [#allocation5], %s222
        // Predicated region
        $region33: #{tpu_custom_call.1} parent=27 // pred_check
          %p224 = pneg %p104
        $region34: #{tpu_custom_call.1} parent=27 // pred_check_branch
          %226 = sbr.rel (%p224) target = $region36
        $region35: #{tpu_custom_call.1} parent=27 // pred_region
          %227 = dma.done %s220, 1024
        $region36: #{tpu_custom_call.1} parent=27 // pred_fallthru
          _
        %s228 = sand.u32 %s57, 1
        %s229 = scalar_lea.sflag [#allocation3], %s228
        %s230 = sand.u32 %s57, 1
        %s231 = smul.addr %s230, 64
        %s232 = scalar_lea.vmem [#allocation2], %s231
        %p233 = pneg %p70
        %p234 = pneg %p67
        %s235 = sand.u32 %s91, 1
        %s236 = scalar_lea.sflag [#allocation6], %s235
        %s237 = sand.u32 %s91, 1
        %s238 = smul.addr %s237, 64
        %s239 = scalar_lea.vmem [#allocation5], %s238
        %p240 = pneg %p104
        %p241 = pneg %p101
        %p242 = pneg %p132
        %p243 = pneg %p129
        %s244 = sand.u32 %s119, 1
        %s245 = scalar_lea.sflag [#allocation4], %s244
        %s246 = sand.u32 %s119, 1
        %s247 = smul.addr %s246, 24
        %s248 = scalar_lea.vmem [#allocation7], %s247
        %s249 = sadd.s32 %s28, %s29
        %p250 = scmp.lt.s32.totalorder %s249, 1
        %s251 = scalar_select %p250, %s249, 1
        %s252 = smul.u32 8, %s251
        %s253 = sadd.s32 %s28, %s29
        %p254 = scmp.lt.s32.totalorder %s253, 1
        %s255 = scalar_select %p254, %s253, 1
        %s256 = smul.u32 8, %s255
        %p257 = scmp.eq.s32.totalorder %s29, 0
        // Predicated region
        $region37: #{tpu_custom_call.1} parent=27 // pred_check
          %p258 = pneg %p257
        $region38: #{tpu_custom_call.1} parent=27 // pred_check_branch
          %260 = sbr.rel (%p258) target = $region40
        $region39: #{tpu_custom_call.1} parent=27 // pred_region
          %261 = vst [vmem:[%s248] sm:$0xff] 0.0
          %262 = vst [vmem:[%s248 + $0x8] sm:$0xff] 0.0
          %263 = vst [vmem:[%s248 + $0x10] sm:$0xff] 0.0
        $region40: #{tpu_custom_call.1} parent=27 // pred_fallthru
          _
        %v264 = vld [vmem:[%s214] sm:$0xff]
        %v265 = vld [vmem:[%s214 + $0x8] sm:$0xff]
        %v266 = vld [vmem:[%s214 + $0x10] sm:$0xff]
        %v267 = vld [vmem:[%s214 + $0x18] sm:$0xff]
        %v268 = vld [vmem:[%s214 + $0x20] sm:$0xff]
        %v269 = vld [vmem:[%s214 + $0x28] sm:$0xff]
        %v270 = vld [vmem:[%s214 + $0x30] sm:$0xff]
        %v271 = vld [vmem:[%s214 + $0x38] sm:$0xff]
        %v272 = vld [vmem:[%s223] sm:$0xff]
        %v273 = vld [vmem:[%s223 + $0x8] sm:$0xff]
        %v274 = vld [vmem:[%s223 + $0x10] sm:$0xff]
        %v275 = vld [vmem:[%s223 + $0x18] sm:$0xff]
        %v276 = vld [vmem:[%s223 + $0x20] sm:$0xff]
        %v277 = vld [vmem:[%s223 + $0x28] sm:$0xff]
        %v278 = vld [vmem:[%s223 + $0x30] sm:$0xff]
        %v279 = vld [vmem:[%s223 + $0x38] sm:$0xff]
        %v280 = vmul.f32 %v264, 0.5
        %v281 = vmul.f32 %v265, 0.5
        %v282 = vmul.f32 %v266, 0.5
        %v283 = vmul.f32 %v267, 0.5
        %v284 = vmul.f32 %v268, 0.5
        %v285 = vmul.f32 %v269, 0.5
        %v286 = vmul.f32 %v270, 0.5
        %v287 = vmul.f32 %v271, 0.5
        %v288 = vtanh.pop %v280
        %v289 = vtanh.pop %v281
        %v290 = vtanh.pop %v282
        %v291 = vtanh.pop %v283
        %v292 = vtanh.pop %v284
        %v293 = vtanh.pop %v285
        %v294 = vtanh.pop %v286
        %v295 = vtanh.pop %v287
        %v296 = vadd.f32 %v288, 1.0
        %v297 = vadd.f32 %v289, 1.0
        %v298 = vadd.f32 %v290, 1.0
        %v299 = vadd.f32 %v291, 1.0
        %v300 = vadd.f32 %v292, 1.0
        %v301 = vadd.f32 %v293, 1.0
        %v302 = vadd.f32 %v294, 1.0
        %v303 = vadd.f32 %v295, 1.0
        %v304 = vmul.f32 %v296, 0.5
        %v305 = vmul.f32 %v297, 0.5
        %v306 = vmul.f32 %v298, 0.5
        %v307 = vmul.f32 %v299, 0.5
        %v308 = vmul.f32 %v300, 0.5
        %v309 = vmul.f32 %v301, 0.5
        %v310 = vmul.f32 %v302, 0.5
        %v311 = vmul.f32 %v303, 0.5
        %v312 = vmul.f32 %v304, %v272
        %v313 = vmul.f32 %v305, %v273
        %v314 = vmul.f32 %v306, %v274
        %v315 = vmul.f32 %v307, %v275
        %v316 = vmul.f32 %v308, %v276
        %v317 = vmul.f32 %v309, %v277
        %v318 = vmul.f32 %v310, %v278
        %v319 = vmul.f32 %v311, %v279
        %v320 = vadd.f32 %v312, %v313
        %v321 = vadd.f32 %v320, %v314
        %v322 = vadd.f32 %v321, %v315
        %v323 = vadd.f32 %v322, %v316
        %v324 = vadd.f32 %v323, %v317
        %v325 = vadd.f32 %v324, %v318
        %v326 = vadd.f32 %v325, %v319
        %v327 = vadd.f32 %v326, 0.0
        %v328 = vadd.f32 %v304, %v305
        %v329 = vadd.f32 %v328, %v306
        %v330 = vadd.f32 %v329, %v307
        %v331 = vadd.f32 %v330, %v308
        %v332 = vadd.f32 %v331, %v309
        %v333 = vadd.f32 %v332, %v310
        %v334 = vadd.f32 %v333, %v311
        %v335 = vadd.f32 %v334, 0.0
        %v336 = vadd.f32 %v272, %v273
        %v337 = vadd.f32 %v336, %v274
        %v338 = vadd.f32 %v337, %v275
        %v339 = vadd.f32 %v338, %v276
        %v340 = vadd.f32 %v339, %v277
        %v341 = vadd.f32 %v340, %v278
        %v342 = vadd.f32 %v341, %v279
        %v343 = vadd.f32 %v342, 0.0
        %v344 = vld [vmem:[%s248] sm:$0xff]
        %v345 = vadd.f32 %v344, %v327
        %346 = vst [vmem:[%s248] sm:$0xff] %v345
        %v347 = vld [vmem:[%s248 + $0x8] sm:$0xff]
        %v348 = vadd.f32 %v347, %v335
        %349 = vst [vmem:[%s248 + $0x8] sm:$0xff] %v348
        %v350 = vld [vmem:[%s248 + $0x10] sm:$0xff]
        %v351 = vadd.f32 %v350, %v343
        %352 = vst [vmem:[%s248 + $0x10] sm:$0xff] %v351
        %s353 = sand.u32 %s119, 1
        %s354 = scalar_lea.sflag [#allocation4], %s353
        %s355 = sand.u32 %s119, 1
        %s356 = smul.addr %s355, 24
        %s357 = scalar_lea.vmem [#allocation7], %s356
        // Predicated region
        $region41: #{tpu_custom_call.1} parent=27 // pred_check
          %p358 = pneg %p129
        $region42: #{tpu_custom_call.1} parent=27 // pred_check_branch
          %360 = sbr.rel (%p358) target = $region44
        $region43: #{tpu_custom_call.1} parent=27 // pred_region
          %s362 = ssub.s32 384, 384
          %363 = vsyncadd %s354, %s362
          %s364 = smul.addr %s28, 3
          %s365 = smul.addr %s27, 6
          %s366 = sadd.s32 %s364, %s365
          %s367 = smul.addr %s366, 128
          %s368 = scalar_lea.hbm %s2, %s367
          %s369 = sshll.u32 %s357, 4
          %s370 = int_to_ptr.vmem [resolvable:$true] %s369
          %375 = dma.vmem_to_hbm [thread:$0]  %s370, 384, %s368, %s354, 128, 128, 8
        $region44: #{tpu_custom_call.1} parent=27 // pred_fallthru
          _
      $region28: #{tpu_custom_call.1} parent=5 // pred_fallthru
        _
      %p376 = scmp.le.s32.totalorder 2, %s17
      // Predicated region
      $region45: #{tpu_custom_call.1} parent=5 // pred_check
        %p377 = pneg %p376
      $region46: #{tpu_custom_call.1} parent=5 // pred_check_branch
        %379 = sbr.rel (%p377) target = $region48
      $region47: #{tpu_custom_call.1} parent=5 // pred_region
        %s380 = ssub.s32 %s17, 2
        // Predicated region
        $region49: #{tpu_custom_call.1} parent=47 // pred_check
          %p381 = pneg %p135
        $region50: #{tpu_custom_call.1} parent=47 // pred_check_branch
          %383 = sbr.rel (%p381) target = $region52
        $region51: #{tpu_custom_call.1} parent=47 // pred_region
          %s384 = sand.u32 %s120, 1
          %s385 = scalar_lea.sflag [#allocation4], %s384
          %s386 = sand.u32 %s120, 1
          %s387 = smul.addr %s386, 24
          %s388 = scalar_lea.vmem [#allocation7], %s387
          %389 = dma.done %s385, 384
        $region52: #{tpu_custom_call.1} parent=47 // pred_fallthru
          _
      $region48: #{tpu_custom_call.1} parent=5 // pred_fallthru
        _
    $region6: #{tpu_custom_call.1} parent=1 // loop_footer
      %s21 = sadd.s32 1, %s17
    $region7: #{tpu_custom_call.1} parent=1 // loop_footer_branch
      %16 = sbr.rel target = $region3
    $region8: #{tpu_custom_call.1} parent=1 // loop_exit
      _
    %390 = vsyncpa [#allocation3], 1
    %s391 = scalar_lea.sflag [#allocation3], 1
    %392 = vsyncpa %s391, 1
    %393 = vsyncpa [#allocation6], 1
    %s394 = scalar_lea.sflag [#allocation6], 1
    %395 = vsyncpa %s394, 1
    %396 = vsyncpa [#allocation4], 1
    %s397 = scalar_lea.sflag [#allocation4], 1
    %398 = vsyncpa %s397, 1

</llo_original>
